<compile_context>
chip_gen: v7x
topology: tpu7x:2x2x1
jax: 0.10.0
libtpu: 0.0.40
codegen_flags: <defaults>
</compile_context>

<pallas_src>
import functools

import numpy as np
import jax
import jax.numpy as jnp
from jax.experimental import pallas as pl
from jax.experimental.pallas import tpu as pltpu

RRELU_SLOPE = (1.0 / 8.0 + 1.0 / 3.0) / 2.0   # 11/48: F.rrelu eval-mode slope
BN_EPS = 1e-5
ACT_DTYPE = jnp.bfloat16                      # activation / MXU-input dtype
LANE = 128
TILE_CAP = 4096                               # max lanes per kernel step

# shift passed to pltpu.roll = _ROLL_SIGN * tap_offset.  pltpu.roll follows the
# jnp.roll convention (out[i] = in[i - shift]) => sign -1; verified by a probe
# kernel in __main__ so a convention change can never silently mirror the taps.
_ROLL_SIGN = -1


def _rrelu(y, slope):
    return jnp.where(y >= 0.0, y, slope * y)


# ----------------------------------------------------------------------------
# Kernel A: 3x3 conv with in-kernel tap generation + BN-folded bias + rrelu.
#   x_ref : (C,    Nt) bf16  -- raw activation slab, lanes = (b, h, w) flattened
#   w_ref : (Cout, 9C) bf16  -- folded weight, contraction order (ky, kx, ci)
#   b_ref : (Cout, 1)  f32   -- folded bias / BN shift
#   o_ref : (Cout, Nt)       -- lane-dense output tile
# Requires: Nt % (H*W) == 0 (boundary masks depend only on the lane index).
# ----------------------------------------------------------------------------
def _conv3x3_kernel(x_ref, w_ref, b_ref, o_ref, *, H, W, slope, apply_act):
    x = x_ref[...]                                   # (C, Nt)
    _, Nt = x.shape
    pos = jax.lax.broadcasted_iota(jnp.int32, (1, Nt), 1)
    wp = pos % W
    hp = (pos // W) % H
    ones = jnp.ones((1, Nt), x.dtype)
    m_w = {-1: (wp > 0).astype(x.dtype), 0: ones, 1: (wp < W - 1).astype(x.dtype)}
    m_h = {-1: (hp > 0).astype(x.dtype), 0: ones, 1: (hp < H - 1).astype(x.dtype)}

    taps = []
    for dy in (-1, 0, 1):
        for dx in (-1, 0, 1):
            if dy == 0 and dx == 0:
                taps.append(x)
                continue
            shift = (_ROLL_SIGN * (dy * W + dx)) % Nt
            t = pltpu.roll(x, shift, axis=1)         # lane rotation (XLU)
            taps.append(t * (m_h[dy] * m_w[dx]))     # zero the padding border
    tap_stack = jnp.concatenate(taps, axis=0)        # (9C, Nt) in VMEM only

    acc = jnp.dot(w_ref[...], tap_stack, preferred_element_type=jnp.float32)
    y = acc + b_ref[...]
    if apply_act:
        y = _rrelu(y, slope)
    o_ref[...] = y.astype(o_ref.dtype)


# ----------------------------------------------------------------------------
# Kernel B: plain fused  act(W @ taps + shift)  (taps precomputed in glue).
# Used for the 2x2/stride-2 head and the tiny (<128 lane) late stages.
# ----------------------------------------------------------------------------
def _matmul_kernel(t_ref, w_ref, b_ref, o_ref, *, slope, apply_act):
    acc = jnp.dot(w_ref[...], t_ref[...], preferred_element_type=jnp.float32)
    y = acc + b_ref[...]
    if apply_act:
        y = _rrelu(y, slope)
    o_ref[...] = y.astype(o_ref.dtype)


def _pick_tile(N, hw, cap=TILE_CAP):
    """Largest lane tile that divides N, is a multiple of hw and of 128."""
    if N <= cap:
        return N
    k = max(cap // hw, 1)
    while k >= 1:
        Nt = k * hw
        if N % Nt == 0 and Nt % LANE == 0:
            return Nt
        k -= 1
    return N


def _matmul_call(taps, w, shift, *, act, out_dtype=ACT_DTYPE):
    KC, N = taps.shape
    Cout = w.shape[0]
    Nt = _pick_tile(N, LANE)
    kern = functools.partial(_matmul_kernel, slope=RRELU_SLOPE, apply_act=act)
    return pl.pallas_call(
        kern,
        out_shape=jax.ShapeDtypeStruct((Cout, N), out_dtype),
        grid=(N // Nt,),
        in_specs=[pl.BlockSpec((KC, Nt), lambda n: (0, n)),
                  pl.BlockSpec((Cout, KC), lambda n: (0, 0)),
                  pl.BlockSpec((Cout, 1), lambda n: (0, 0))],
        out_specs=pl.BlockSpec((Cout, Nt), lambda n: (0, n)),
        compiler_params=pltpu.CompilerParams(
            dimension_semantics=("parallel",)),
    )(taps, w, shift)


def conv3x3_bn_act(x, w, shift, *, act, out_dtype=ACT_DTYPE):
    """3x3 / stride 1 / pad 1 conv (+folded BN, +rrelu).  x: (C,B,H,W)."""
    C, B, H, W = x.shape
    Cout = w.shape[0]
    N = B * H * W
    if N % LANE == 0:
        # In-kernel tap generation: activation slab read from HBM exactly once.
        Nt = _pick_tile(N, H * W)
        kern = functools.partial(_conv3x3_kernel, H=H, W=W,
                                 slope=RRELU_SLOPE, apply_act=act)
        out = pl.pallas_call(
            kern,
            out_shape=jax.ShapeDtypeStruct((Cout, N), out_dtype),
            grid=(N // Nt,),
            in_specs=[pl.BlockSpec((C, Nt), lambda n: (0, n)),
                      pl.BlockSpec((Cout, 9 * C), lambda n: (0, 0)),
                      pl.BlockSpec((Cout, 1), lambda n: (0, 0))],
            out_specs=pl.BlockSpec((Cout, Nt), lambda n: (0, n)),
            compiler_params=pltpu.CompilerParams(
                dimension_semantics=("parallel",)),
        )(x.reshape(C, N), w, shift)
    else:
        # Tiny late stages: glue-level im2col (slab negligible; weights dominate).
        out = _matmul_call(_taps3x3(x), w, shift, act=act, out_dtype=out_dtype)
    return out.reshape(Cout, B, H, W)


# ----------------------------------------------------------------------------
# Layout plumbing in plain JAX (layout: (C, B, H, W))
# ----------------------------------------------------------------------------
def _taps3x3(x):
    """(C,B,H,W) -> (9C, B*H*W) tap stack, order (ky, kx, ci)."""
    C, B, H, W = x.shape
    xp = jnp.pad(x, ((0, 0), (0, 0), (1, 1), (1, 1)))
    taps = [xp[:, :, dy:dy + H, dx:dx + W] for dy in range(3) for dx in range(3)]
    return jnp.concatenate(taps, axis=0).reshape(9 * C, B * H * W)


def _taps2x2_s2(x):
    """(C,B,H,W) -> (4C, B*(H/2)*(W/2)) tap stack for conv 2x2, stride 2."""
    C, B, H, W = x.shape
    taps = [x[:, :, dy::2, dx::2] for dy in range(2) for dx in range(2)]
    return jnp.concatenate(taps, axis=0).reshape(4 * C, B * (H // 2) * (W // 2))


def _avg_pool2(x):
    """nn.AvgPool2d(2,2): (C,B,H,W) -> (C,B,H/2,W/2), f32 accumulate."""
    x32 = x.astype(jnp.float32)
    y = 0.25 * (x32[:, :, 0::2, 0::2] + x32[:, :, 0::2, 1::2]
                + x32[:, :, 1::2, 0::2] + x32[:, :, 1::2, 1::2])
    return y.astype(x.dtype)


# ----------------------------------------------------------------------------
# Model forward (eval mode)
# ----------------------------------------------------------------------------
def res_down(x, sp):
    """One ResDown stage: (Cin,B,H,W) -> (Cout,B,H/2,W/2)."""
    h1 = conv3x3_bn_act(x, sp["w1"], sp["sh1"], act=True)
    # out = rrelu(BN2(conv2(pool(h1))) + conv3(pool(x))): conv2(+BN2) and conv3
    # fused into one matmul via channel-axis concat of the pooled inputs.
    pooled = jnp.concatenate([_avg_pool2(h1), _avg_pool2(x)], axis=0)
    return conv3x3_bn_act(pooled, sp["w23"], sp["sh23"], act=True)


def resx_forward(params, x_nchw):
    """ResX forward (eval). x: (B,C,H,W) f32 -> (x, mu, log_var=None)."""
    x = jnp.transpose(x_nchw, (1, 0, 2, 3)).astype(ACT_DTYPE)   # (C,B,H,W)
    for sp in params["stages"]:
        x = res_down(x, sp)
    _, B, H, W = x.shape
    mu = _matmul_call(_taps2x2_s2(x), params["w_mu"], params["sh_mu"],
                      act=False, out_dtype=jnp.float32)          # (z, B*(H/2)*(W/2))
    z = params["w_mu"].shape[0]
    mu = jnp.transpose(mu.reshape(z, B, H // 2, W // 2), (1, 0, 2, 3))
    return mu, mu, None            # eval(): x = mu, log_var = None


# ----------------------------------------------------------------------------
# Pure-JAX reference of the same math (used for the numerical self-check)
# ----------------------------------------------------------------------------
def _ref_conv3x3(x, w, shift, *, act, out_dtype=ACT_DTYPE):
    C, B, H, W = x.shape
    Cout = w.shape[0]
    y = jnp.dot(w, _taps3x3(x), preferred_element_type=jnp.float32) + shift
    if act:
        y = _rrelu(y, RRELU_SLOPE)
    return y.astype(out_dtype).reshape(Cout, B, H, W)


def resx_forward_ref(params, x_nchw):
    x = jnp.transpose(x_nchw, (1, 0, 2, 3)).astype(ACT_DTYPE)
    for sp in params["stages"]:
        h1 = _ref_conv3x3(x, sp["w1"], sp["sh1"], act=True)
        pooled = jnp.concatenate([_avg_pool2(h1), _avg_pool2(x)], axis=0)
        x = _ref_conv3x3(pooled, sp["w23"], sp["sh23"], act=True)
    _, B, H, W = x.shape
    mu = (jnp.dot(params["w_mu"], _taps2x2_s2(x),
                  preferred_element_type=jnp.float32) + params["sh_mu"])
    z = params["w_mu"].shape[0]
    mu = jnp.transpose(mu.reshape(z, B, H // 2, W // 2), (1, 0, 2, 3))
    return mu, mu, None


# ----------------------------------------------------------------------------
# Deterministic parameter init + eval-mode BN folding
# ----------------------------------------------------------------------------
def _init_conv(key, kh, kw, cin, cout):
    std = 1.0 / np.sqrt(kh * kw * cin)
    k_w, k_b = jax.random.split(key)
    w = jax.random.normal(k_w, (kh, kw, cin, cout), jnp.float32) * std
    b = jax.random.uniform(k_b, (cout,), jnp.float32, -std, std)
    return w, b


def _init_bn(key, c):
    k1, k2, k3, k4 = jax.random.split(key, 4)
    gamma = 1.0 + 0.1 * jax.random.normal(k1, (c,), jnp.float32)
    beta = 0.1 * jax.random.normal(k2, (c,), jnp.float32)
    rmean = 0.1 * jax.random.normal(k3, (c,), jnp.float32)
    rvar = 1.0 + 0.1 * jax.random.uniform(k4, (c,), jnp.float32)
    scale = gamma / jnp.sqrt(rvar + BN_EPS)       # eval-mode BN fold
    shift = beta - rmean * scale
    return scale, shift


def _fold_single(w, b, scale=None, shift=None):
    """conv (kh,kw,cin,cout) [+ eval BN] -> (Cout,K*Cin) bf16, (Cout,1) f32."""
    kh, kw_, cin, cout = w.shape
    if scale is None:
        scale = jnp.ones((cout,), jnp.float32)
        shift = jnp.zeros((cout,), jnp.float32)
    wf = (w * scale[None, None, None, :]).reshape(kh * kw_ * cin, cout).T
    sh = ((b * scale + shift)[:, None]).astype(jnp.float32)
    return wf.astype(ACT_DTYPE), sh


def _init_res_down(key, cin, cout):
    cmid = cout // 2
    k1, k2, k3, k4, k5 = jax.random.split(key, 5)
    w1, b1 = _init_conv(k1, 3, 3, cin, cmid)
    s1, t1 = _init_bn(k2, cmid)
    w2, b2 = _init_conv(k3, 3, 3, cmid, cout)
    s2, t2 = _init_bn(k4, cout)
    w3, b3 = _init_conv(k5, 3, 3, cin, cout)
    w1f, sh1 = _fold_single(w1, b1, s1, t1)
    # conv2(+BN2) and conv3 fused: the pooled inputs are concatenated on the
    # channel axis, so combine the weights on the input-channel axis inside
    # every (ky,kx) tap group, then flatten in (ky,kx,ci) order.
    w2s = w2 * s2[None, None, None, :]
    wc = jnp.concatenate([w2s, w3], axis=2)                   # (3,3,cmid+cin,cout)
    w23 = wc.reshape(9 * (cmid + cin), cout).T.astype(ACT_DTYPE)
    sh23 = ((b2 * s2 + t2 + b3)[:, None]).astype(jnp.float32)
    return dict(w1=w1f, sh1=sh1, w23=w23, sh23=sh23)


def init_resx(key, channels, ch, z):
    keys = jax.random.split(key, 8)
    dims = [(channels, ch), (ch, 2 * ch), (2 * ch, 4 * ch),
            (4 * ch, 8 * ch), (8 * ch, 8 * ch)]
    stages = [_init_res_down(keys[i], ci, co) for i, (ci, co) in enumerate(dims)]
    w_mu, b_mu = _init_conv(keys[5], 2, 2, 8 * ch, z)
    wf_mu, sh_mu = _fold_single(w_mu, b_mu)
    _ = _init_conv(keys[6], 2, 2, 8 * ch, z)   # conv_log_var: unused in eval fwd
    return dict(stages=stages, w_mu=wf_mu, sh_mu=sh_mu)


# ----------------------------------------------------------------------------
def _detect_roll_sign():
    """Probe pltpu.roll's shift convention with a trivial kernel."""
    def probe(x_ref, o_ref):
        o_ref[...] = pltpu.roll(x_ref[...], 1, axis=1)
    x = jax.lax.broadcasted_iota(jnp.float32, (8, 128), 1)
    y = pl.pallas_call(
        probe, out_shape=jax.ShapeDtypeStruct((8, 128), jnp.float32))(x)
    # jnp.roll convention: out[i] = in[i-1]  ->  y[0,1] == 0.
    return -1 if float(y[0, 1]) == 0.0 else 1


if __name__ == "__main__":
    _ROLL_SIGN = _detect_roll_sign()

    key = jax.random.PRNGKey(0)
    k_param, k_x = jax.random.split(key)

    # Architecture needs >= 64x64 spatial (five 2x downsamples + 2x2/s2 head);
    # keep channels / z small for the demo.
    B, C, H, W = 2, 3, 64, 64
    ch, z = 8, 16

    params = init_resx(k_param, channels=C, ch=ch, z=z)
    x_nchw = jax.random.normal(k_x, (B, C, H, W), jnp.float32)

    fwd = jax.jit(resx_forward)
    out, mu, log_var = fwd(params, x_nchw)
    out = jax.block_until_ready(out)
    mu = jax.block_until_ready(mu)

    assert out.shape == (B, z, 1, 1), out.shape
    assert mu.shape == (B, z, 1, 1), mu.shape
    assert log_var is None
    assert bool(jnp.all(jnp.isfinite(mu)))

    # Numerical self-check against a pure-JAX reference of the same math.
    _, ref_mu, _ = jax.jit(resx_forward_ref)(params, x_nchw)
    ref_mu = jax.block_until_ready(ref_mu)
    np.testing.assert_allclose(np.asarray(mu), np.asarray(ref_mu),
                               rtol=5e-2, atol=5e-2)

    print("KERNEL_OK")
</pallas_src>

<mosaic_0001>
module attributes {stable_mosaic.version = 11 : i64} {
  func.func @probe(%arg0: memref<8x128xf32, #tpu.memory_space<vmem>>, %arg1: memref<8x128xf32, #tpu.memory_space<vmem>>) attributes {dimension_semantics = [], scalar_prefetch = 0 : i64, scratch_operands = 0 : i64, tpu.core_type = #tpu.core_type<tc>} {
    %c0 = arith.constant 0 : index
    %c0_0 = arith.constant 0 : index
    %0 = vector.load %arg0[%c0, %c0_0] : memref<8x128xf32, #tpu.memory_space<vmem>>, vector<8x128xf32>
    %c1_i32 = arith.constant 1 : i32
    %1 = tpu.dynamic_rotate %0 by %c1_i32 dim 1 : vector<8x128xf32>, i32 -> vector<8x128xf32>
    %c0_1 = arith.constant 0 : index
    %c0_2 = arith.constant 0 : index
    %2 = vector.load %arg1[%c0_1, %c0_2] : memref<8x128xf32, #tpu.memory_space<vmem>>, vector<8x128xf32>
    tpu.vector_store %arg1[%c0_1, %c0_2], %1 {strides = array<i32>} : memref<8x128xf32, #tpu.memory_space<vmem>>, vector<8x128xf32>,
    return
  }
}

</mosaic_0001>

<llo_original>
// kernel: tpu_custom_call.1
$region0: #{tpu_custom_call.1}
  #allocation0 [shape = 'u32[]', space=smem, size = 0x4, offset = 0x4, fixed_abs, tag = 'smem constant byte address 0x4 - core index']
  #allocation1 [shape = 'u32[144,128]{1,0:T(1,128)}', space=vmem, size = 0x12000, scoped, tag = 'internal scratch']
  %s0 = inlined_call_operand.hbm [shape: f32[8,128], index: 0, kind: input, shape index: {}]
  %s1 = inlined_call_operand.hbm [shape: f32[8,128], index: 1, kind: output, shape index: {}]
  %s2 = sld [smem:[#allocation0]]
  $region18: #{tpu_custom_call.1} parent=0
    _
  %s4 = ssub.s32 1, %s2
  %s5 = scalar_select 0, %s4, %s2
  $region1: #{tpu_custom_call.1} parent=0
    #allocation2 [shape = 'u8[4096]{0}', space=vmem, size = 0x1000, scoped, tag = 'input window, operand 0, single buffered']
    #allocation3 [shape = 's32[1]{0}', space=sflag, size = 0x4, scoped, tag = 'scoped memory for tpu_custom_call.1']
    #allocation4 [shape = 's32[1]{0}', space=sflag, size = 0x4, scoped, tag = 'scoped memory for tpu_custom_call.1']
    #allocation5 [shape = 'u8[4096]{0}', space=vmem, size = 0x1000, scoped, tag = 'output window, operand 0, single buffered']
    %6 = vsyncpa [#allocation3], 0
    %7 = vsyncpa [#allocation4], 0
    // Predicated region
    $region2: #{tpu_custom_call.1} parent=1 // pred_check
      _
    $region3: #{tpu_custom_call.1} parent=1 // pred_check_branch
      %9 = sbr.rel (0) target = $region5
    $region4: #{tpu_custom_call.1} parent=1 // pred_region
      %s11 = ssub.s32 128, 128
      %12 = vsyncadd [#allocation3], %s11
      %s14 = sshll.u32 [#allocation2], 4
      %s15 = int_to_ptr.vmem [resolvable:$true] %s14
      %17 = dma.hbm_to_vmem [thread:$0]  %s0, 128, %s15, [#allocation3]
    $region5: #{tpu_custom_call.1} parent=1 // pred_fallthru
      _
    // Predicated region
    $region6: #{tpu_custom_call.1} parent=1 // pred_check
      _
    $region7: #{tpu_custom_call.1} parent=1 // pred_check_branch
      %19 = sbr.rel (0) target = $region9
    $region8: #{tpu_custom_call.1} parent=1 // pred_region
      %20 = dma.done [#allocation3], 128
    $region9: #{tpu_custom_call.1} parent=1 // pred_fallthru
      _
    %v21 = vld [vmem:[#allocation2] sm:$0xff]
    %22 = vrot.lane.b32.xlu0 %v21, 1
    %v23 = vpop.permute.xlu0 %22
    %24 = vst [vmem:[#allocation5] sm:$0xff] %v23
    // Predicated region
    $region10: #{tpu_custom_call.1} parent=1 // pred_check
      _
    $region11: #{tpu_custom_call.1} parent=1 // pred_check_branch
      %26 = sbr.rel (0) target = $region13
    $region12: #{tpu_custom_call.1} parent=1 // pred_region
      %s28 = ssub.s32 128, 128
      %29 = vsyncadd [#allocation4], %s28
      %s31 = sshll.u32 [#allocation5], 4
      %s32 = int_to_ptr.vmem [resolvable:$true] %s31
      %34 = dma.vmem_to_hbm [thread:$0]  %s32, 128, %s1, [#allocation4]
    $region13: #{tpu_custom_call.1} parent=1 // pred_fallthru
      _
    // Predicated region
    $region14: #{tpu_custom_call.1} parent=1 // pred_check
      _
    $region15: #{tpu_custom_call.1} parent=1 // pred_check_branch
      %36 = sbr.rel (0) target = $region17
    $region16: #{tpu_custom_call.1} parent=1 // pred_region
      %37 = dma.done [#allocation4], 128
    $region17: #{tpu_custom_call.1} parent=1 // pred_fallthru
      _
    %38 = vsyncpa [#allocation3], 1
    %39 = vsyncpa [#allocation4], 1

</llo_original>
